<compile_context>
chip_gen: v7x
topology: tpu7x:2x2x1
jax: 0.10.0
libtpu: 0.0.40
codegen_flags: <defaults>
</compile_context>

<pallas_src>
import functools

import jax
import jax.numpy as jnp
from jax.experimental import pallas as pl
from jax.experimental.pallas import tpu as pltpu


def _round_up(n, m):
    return (n + m - 1) // m * m


def _readout_kernel(x_ref, w1t_ref, b1_ref, w2_ref, b2_ref, o_ref,
                    *, negative_slope):
    # fc1: (BLK, 128) @ (128, 64) + (1, 64)   -> MXU, f32 accumulate
    x = x_ref[...]
    h = jnp.dot(x, w1t_ref[...], preferred_element_type=jnp.float32)
    h = h + b1_ref[...]
    # LeakyReLU on the f32 accumulator (VPU)
    h = jnp.where(h > 0, h, negative_slope * h)
    # Dropout (eval mode) = identity
    # fc2 as w2 (1, 64) contracted with h (BLK, 64) over the feature dim:
    #   result is a lane-dense (1, BLK) row (avoids a (BLK, 1) column output
    #   that would be written with masked single-lane stores).
    out = jax.lax.dot_general(
        w2_ref[...], h,
        dimension_numbers=(((1,), (1,)), ((), ())),
        preferred_element_type=jnp.float32)          # (1, BLK)
    out = out + b2_ref[0]                            # scalar bias from SMEM
    o_ref[...] = out.astype(o_ref.dtype)


def readout_forward(x, w1, b1, w2, b2, *, negative_slope=0.01,
                    block_rows=4096):
    """x: (B, 128) f32. w1: (64, 128), b1: (64,), w2: (1, 64), b2: (1,)."""
    B, F = x.shape
    assert F == 128, F

    # Batch tile: multiple of 8 (sublane), capped at block_rows.
    blk = min(block_rows, _round_up(B, 8))
    num_blocks = pl.cdiv(B, blk)

    w1t = jnp.asarray(w1).T.astype(x.dtype)          # (128, 64)
    b1_row = jnp.asarray(b1).reshape(1, 64).astype(jnp.float32)
    w2_row = jnp.asarray(w2).reshape(1, 64).astype(jnp.float32)
    b2_s = jnp.asarray(b2).reshape(1).astype(jnp.float32)

    kernel = functools.partial(_readout_kernel, negative_slope=negative_slope)

    out = pl.pallas_call(
        kernel,
        out_shape=jax.ShapeDtypeStruct((num_blocks, blk), x.dtype),
        grid=(num_blocks,),
        in_specs=[
            # x: streamed / double-buffered over the batch grid axis.
            pl.BlockSpec((blk, 128), lambda i: (i, 0)),
            # Weights & bias row: constant index_map -> VMEM-resident.
            pl.BlockSpec((128, 64), lambda i: (0, 0)),
            pl.BlockSpec((1, 64), lambda i: (0, 0)),
            pl.BlockSpec((1, 64), lambda i: (0, 0)),
            # b2 scalar in SMEM.
            pl.BlockSpec(memory_space=pltpu.MemorySpace.SMEM),
        ],
        # Lane-dense output row per grid step.
        out_specs=pl.BlockSpec((1, blk), lambda i: (i, 0)),
        compiler_params=pltpu.CompilerParams(
            dimension_semantics=("parallel",)),
    )(x, w1t, b1_row, w2_row, b2_s)

    # Drop the padded tail rows of the last block (they never alias valid rows).
    out_flat = out.reshape(num_blocks * blk)[:B]
    # torch .squeeze() removes all size-1 dims -> 0-D scalar when B == 1.
    return jnp.squeeze(out_flat) if B == 1 else out_flat


def _reference(x, w1, b1, w2, b2, negative_slope):
    h = x @ w1.T + b1
    h = jnp.where(h > 0, h, negative_slope * h)
    out = h @ w2.T + b2
    return jnp.squeeze(out)


if __name__ == "__main__":
    key = jax.random.PRNGKey(0)
    k_x, k_w1, k_b1, k_w2, k_b2, k_x2 = jax.random.split(key, 6)

    negative_slope = 0.2

    # Deterministic parameter init (PyTorch Linear-like uniform bounds).
    w1 = jax.random.uniform(k_w1, (64, 128), jnp.float32,
                            minval=-1 / jnp.sqrt(128.0), maxval=1 / jnp.sqrt(128.0))
    b1 = jax.random.uniform(k_b1, (64,), jnp.float32,
                            minval=-1 / jnp.sqrt(128.0), maxval=1 / jnp.sqrt(128.0))
    w2 = jax.random.uniform(k_w2, (1, 64), jnp.float32,
                            minval=-1 / jnp.sqrt(64.0), maxval=1 / jnp.sqrt(64.0))
    b2 = jax.random.uniform(k_b2, (1,), jnp.float32,
                            minval=-1 / jnp.sqrt(64.0), maxval=1 / jnp.sqrt(64.0))

    # Small batch (single block).
    B = 8
    x = jax.random.normal(k_x, (B, 128), dtype=jnp.float32)
    out = readout_forward(x, w1, b1, w2, b2, negative_slope=negative_slope)
    out = jax.block_until_ready(out)
    ref = _reference(x, w1, b1, w2, b2, negative_slope)
    assert out.shape == (B,), out.shape
    assert jnp.allclose(out, ref, atol=1e-5, rtol=1e-5), (out, ref)

    # Batch that is not a multiple of the block size (exercises the grid path
    # and tail-block padding/slicing).
    B2 = 300
    x2 = jax.random.normal(k_x2, (B2, 128), dtype=jnp.float32)
    out2 = readout_forward(x2, w1, b1, w2, b2,
                           negative_slope=negative_slope, block_rows=128)
    out2 = jax.block_until_ready(out2)
    ref2 = _reference(x2, w1, b1, w2, b2, negative_slope)
    assert out2.shape == (B2,), out2.shape
    assert jnp.allclose(out2, ref2, atol=1e-5, rtol=1e-5)

    print("KERNEL_OK")
</pallas_src>

<mosaic_0001>
module attributes {stable_mosaic.version = 11 : i64} {
  func.func @_readout_kernel(%arg0: i32, %arg1: memref<8x128xf32, #tpu.memory_space<vmem>>, %arg2: memref<128x64xf32, #tpu.memory_space<vmem>>, %arg3: memref<1x64xf32, #tpu.memory_space<vmem>>, %arg4: memref<1x64xf32, #tpu.memory_space<vmem>>, %arg5: memref<1xf32, #tpu.memory_space<smem>>, %arg6: memref<1x8xf32, #tpu.memory_space<vmem>>) attributes {dimension_semantics = [#tpu.dimension_semantics<parallel>], iteration_bounds = array<i64: 1>, scalar_prefetch = 0 : i64, scratch_operands = 0 : i64, tpu.core_type = #tpu.core_type<tc>, window_params = [{transform_indices = @transform_0, window_bounds = array<i64: 8, 128>}, {pipeline_mode = #tpu.pipeline_mode<synchronous>, transform_indices = @transform_1, window_bounds = array<i64: 128, 64>}, {pipeline_mode = #tpu.pipeline_mode<synchronous>, transform_indices = @transform_2, window_bounds = array<i64: 1, 64>}, {pipeline_mode = #tpu.pipeline_mode<synchronous>, transform_indices = @transform_3, window_bounds = array<i64: 1, 64>}, {transform_indices = @transform_4, window_bounds = array<i64: 1>}, {transform_indices = @transform_5, window_bounds = array<i64: 1, 8>}]} {
    %c0 = arith.constant 0 : index
    %c0_0 = arith.constant 0 : index
    %0 = vector.load %arg1[%c0, %c0_0] : memref<8x128xf32, #tpu.memory_space<vmem>>, vector<8x128xf32>
    %c0_1 = arith.constant 0 : index
    %c0_2 = arith.constant 0 : index
    %1 = vector.load %arg2[%c0_1, %c0_2] : memref<128x64xf32, #tpu.memory_space<vmem>>, vector<128x64xf32>
    %cst = arith.constant dense<0.000000e+00> : vector<8x64xf32>
    %2 = tpu.matmul %0, %1, %cst {dimension_numbers = #tpu.dot_dimension_numbers<[1], [0], [0], [1], [0, 0, 1, 1], [], []>} : vector<8x128xf32>, vector<128x64xf32>, vector<8x64xf32> -> vector<8x64xf32>
    %c0_3 = arith.constant 0 : index
    %c0_4 = arith.constant 0 : index
    %3 = vector.load %arg3[%c0_3, %c0_4] : memref<1x64xf32, #tpu.memory_space<vmem>>, vector<1x64xf32>
    %4 = vector.broadcast %3 : vector<1x64xf32> to vector<8x64xf32>
    %5 = arith.addf %2, %4 : vector<8x64xf32>
    %cst_5 = arith.constant 0.000000e+00 : f32
    %6 = vector.broadcast %cst_5 : f32 to vector<8x64xf32>
    %7 = arith.cmpf ogt, %5, %6 : vector<8x64xf32>
    %cst_6 = arith.constant 2.000000e-01 : f32
    %8 = vector.broadcast %cst_6 : f32 to vector<8x64xf32>
    %9 = arith.mulf %8, %5 : vector<8x64xf32>
    %10 = arith.select %7, %5, %9 : vector<8x64xi1>, vector<8x64xf32>
    %c0_7 = arith.constant 0 : index
    %c0_8 = arith.constant 0 : index
    %11 = vector.load %arg4[%c0_7, %c0_8] : memref<1x64xf32, #tpu.memory_space<vmem>>, vector<1x64xf32>
    %cst_9 = arith.constant dense<0.000000e+00> : vector<1x8xf32>
    %12 = tpu.matmul %11, %10, %cst_9 {dimension_numbers = #tpu.dot_dimension_numbers<[1], [1], [0], [0], [0, 0, 1, 0], [], []>} : vector<1x64xf32>, vector<8x64xf32>, vector<1x8xf32> -> vector<1x8xf32>
    %c0_10 = arith.constant 0 : index
    %13 = memref.load %arg5[%c0_10] : memref<1xf32, #tpu.memory_space<smem>>
    %14 = vector.broadcast %13 : f32 to vector<1x8xf32>
    %15 = arith.addf %12, %14 : vector<1x8xf32>
    %c0_11 = arith.constant 0 : index
    %c0_12 = arith.constant 0 : index
    %16 = vector.load %arg6[%c0_11, %c0_12] : memref<1x8xf32, #tpu.memory_space<vmem>>, vector<1x8xf32>
    tpu.vector_store %arg6[%c0_11, %c0_12], %15 {strides = array<i32>} : memref<1x8xf32, #tpu.memory_space<vmem>>, vector<1x8xf32>,
    return
  }
  func.func @transform_0(%arg0: i32) -> (i32, i32) {
    %c0_i32 = arith.constant 0 : i32
    %c0_i32_0 = arith.constant 0 : i32
    return %arg0, %c0_i32 : i32, i32
  }
  func.func @transform_1(%arg0: i32) -> (i32, i32) {
    %c0_i32 = arith.constant 0 : i32
    %c0_i32_0 = arith.constant 0 : i32
    %c0_i32_1 = arith.constant 0 : i32
    return %c0_i32, %c0_i32_0 : i32, i32
  }
  func.func @transform_2(%arg0: i32) -> (i32, i32) {
    %c0_i32 = arith.constant 0 : i32
    %c0_i32_0 = arith.constant 0 : i32
    %c0_i32_1 = arith.constant 0 : i32
    return %c0_i32, %c0_i32_0 : i32, i32
  }
  func.func @transform_3(%arg0: i32) -> (i32, i32) {
    %c0_i32 = arith.constant 0 : i32
    %c0_i32_0 = arith.constant 0 : i32
    %c0_i32_1 = arith.constant 0 : i32
    return %c0_i32, %c0_i32_0 : i32, i32
  }
  func.func @transform_4(%arg0: i32) -> i32 {
    %c0_i32 = arith.constant 0 : i32
    %c0_i32_0 = arith.constant 0 : i32
    return %c0_i32 : i32
  }
  func.func @transform_5(%arg0: i32) -> (i32, i32) {
    %c0_i32 = arith.constant 0 : i32
    %c0_i32_0 = arith.constant 0 : i32
    return %arg0, %c0_i32 : i32, i32
  }
}

</mosaic_0001>

<llo_original>
// kernel: tpu_custom_call.1
$region0: #{tpu_custom_call.1}
  #allocation0 [shape = 'u32[]', space=smem, size = 0x4, offset = 0x4, fixed_abs, tag = 'smem constant byte address 0x4 - core index']
  #allocation1 [shape = 'u32[144,128]{1,0:T(1,128)}', space=vmem, size = 0x12000, scoped, tag = 'internal scratch']
  #allocation2 [shape = 'f32[1]{0:T(128)S(6)}', space=smem, size = 0x200, scoped, tag = 'scoped memory for tpu_custom_call.1']
  %s0 = inlined_call_operand.vmem [shape: f32[8,128], index: 0, kind: input, shape index: {}]
  %s1 = inlined_call_operand.vmem [shape: f32[128,64], index: 1, kind: input, shape index: {}]
  %s2 = inlined_call_operand.vmem [shape: f32[1,64], index: 2, kind: input, shape index: {}]
  %s3 = inlined_call_operand.vmem [shape: f32[1,64], index: 3, kind: input, shape index: {}]
  %s4 = inlined_call_operand.<no memory space> [shape: f32[1], index: 4, kind: input, shape index: {}]
  %s5 = inlined_call_operand.hbm [shape: f32[1,8], index: 5, kind: output, shape index: {}]
  %s6 = sld [smem:[#allocation0]]
  $region30: #{tpu_custom_call.1} parent=0
    _
  %s8 = ssub.s32 1, %s6
  %s9 = scalar_select 0, %s8, %s6
  %10 = sst [smem:[#allocation2]] %s4
  $region1: #{tpu_custom_call.1} parent=0
    #allocation3 [shape = 'u8[512]{0}', space=vmem, size = 0x400, scoped, tag = 'output window, operand 0, single buffered']
    #allocation4 [shape = 's32[1]{0}', space=sflag, size = 0x4, scoped, tag = 'scoped memory for tpu_custom_call.1']
    %11 = vsyncpa [#allocation4], 0
    // Predicated region
    $region2: #{tpu_custom_call.1} parent=1 // pred_check
      _
    $region3: #{tpu_custom_call.1} parent=1 // pred_check_branch
      %13 = sbr.rel (0) target = $region5
    $region4: #{tpu_custom_call.1} parent=1 // pred_region
      _
    $region5: #{tpu_custom_call.1} parent=1 // pred_fallthru
      _
    // Predicated region
    $region6: #{tpu_custom_call.1} parent=1 // pred_check
      _
    $region7: #{tpu_custom_call.1} parent=1 // pred_check_branch
      %15 = sbr.rel (0) target = $region9
    $region8: #{tpu_custom_call.1} parent=1 // pred_region
      _
    $region9: #{tpu_custom_call.1} parent=1 // pred_fallthru
      _
    // Predicated region
    $region10: #{tpu_custom_call.1} parent=1 // pred_check
      _
    $region11: #{tpu_custom_call.1} parent=1 // pred_check_branch
      %17 = sbr.rel (0) target = $region13
    $region12: #{tpu_custom_call.1} parent=1 // pred_region
      _
    $region13: #{tpu_custom_call.1} parent=1 // pred_fallthru
      _
    // Predicated region
    $region14: #{tpu_custom_call.1} parent=1 // pred_check
      _
    $region15: #{tpu_custom_call.1} parent=1 // pred_check_branch
      %19 = sbr.rel (0) target = $region17
    $region16: #{tpu_custom_call.1} parent=1 // pred_region
      _
    $region17: #{tpu_custom_call.1} parent=1 // pred_fallthru
      _
    // Predicated region
    $region18: #{tpu_custom_call.1} parent=1 // pred_check
      _
    $region19: #{tpu_custom_call.1} parent=1 // pred_check_branch
      %21 = sbr.rel (0) target = $region21
    $region20: #{tpu_custom_call.1} parent=1 // pred_region
      _
    $region21: #{tpu_custom_call.1} parent=1 // pred_fallthru
      _
    %v22 = vld [vmem:[%s0] sm:$0xff]
    %v23 = vld [vmem:[%s1] sm:$0xff]
    %v24 = vld [vmem:[%s1 + $0x8] sm:$0xff]
    %v25 = vld [vmem:[%s1 + $0x10] sm:$0xff]
    %v26 = vld [vmem:[%s1 + $0x18] sm:$0xff]
    %v27 = vld [vmem:[%s1 + $0x20] sm:$0xff]
    %v28 = vld [vmem:[%s1 + $0x28] sm:$0xff]
    %v29 = vld [vmem:[%s1 + $0x30] sm:$0xff]
    %v30 = vld [vmem:[%s1 + $0x38] sm:$0xff]
    %v31 = vld [vmem:[%s1 + $0x40] sm:$0xff]
    %v32 = vld [vmem:[%s1 + $0x48] sm:$0xff]
    %v33 = vld [vmem:[%s1 + $0x50] sm:$0xff]
    %v34 = vld [vmem:[%s1 + $0x58] sm:$0xff]
    %v35 = vld [vmem:[%s1 + $0x60] sm:$0xff]
    %v36 = vld [vmem:[%s1 + $0x68] sm:$0xff]
    %v37 = vld [vmem:[%s1 + $0x70] sm:$0xff]
    %v38 = vld [vmem:[%s1 + $0x78] sm:$0xff]
    %v39 = vld [vmem:[%s2] sm:$0x1]
    %v41 = vlaneseq
    %v42 = vshrl.u32 %v41, 7
    %v43 = vsub.s32 0, %v42
    %v44 = vrot.slane %v39, %v43
    %46 = vmatprep.subr.mxu0 0.0
    %47 = vmatpush1.msra.mxu0 %v23
    %48 = vmatprep.subr.mxu0 0.0
    %49 = vmatpush1.msra.mxu0 %v24
    %50 = vmatprep.subr.mxu0 0.0
    %51 = vmatpush1.msra.mxu0 %v25
    %52 = vmatprep.subr.mxu0 0.0
    %53 = vmatpush1.msra.mxu0 %v26
    %54 = vmatprep.subr.mxu0 0.0
    %55 = vmatpush1.msra.mxu0 %v27
    %56 = vmatprep.subr.mxu0 0.0
    %57 = vmatpush1.msra.mxu0 %v28
    %58 = vmatprep.subr.mxu0 0.0
    %59 = vmatpush1.msra.mxu0 %v29
    %60 = vmatprep.subr.mxu0 0.0
    %61 = vmatpush1.msra.mxu0 %v30
    %62 = vmatprep.subr.mxu0 0.0
    %63 = vmatpush1.msra.mxu0 %v31
    %64 = vmatprep.subr.mxu0 0.0
    %65 = vmatpush1.msra.mxu0 %v32
    %66 = vmatprep.subr.mxu0 0.0
    %67 = vmatpush1.msra.mxu0 %v33
    %68 = vmatprep.subr.mxu0 0.0
    %69 = vmatpush1.msra.mxu0 %v34
    %70 = vmatprep.subr.mxu0 0.0
    %71 = vmatpush1.msra.mxu0 %v35
    %72 = vmatprep.subr.mxu0 0.0
    %73 = vmatpush1.msra.mxu0 %v36
    %74 = vmatprep.subr.mxu0 0.0
    %75 = vmatpush1.msra.mxu0 %v37
    %76 = vmatprep.subr.mxu0 0.0
    %77 = vmatpush1.msra.mxu0 %v38
    %78 = vmatprep.subr.mxu0 0.0
    %79 = vmatpush1.msra.mxu0 0.0
    %80 = vmatprep.subr.mxu0 0.0
    %81 = vmatpush1.msra.mxu0 0.0
    %82 = vmatprep.subr.mxu0 0.0
    %83 = vmatpush1.msra.mxu0 0.0
    %84 = vmatprep.subr.mxu0 0.0
    %85 = vmatpush1.msra.mxu0 0.0
    %86 = vmatprep.subr.mxu0 0.0
    %87 = vmatpush1.msra.mxu0 0.0
    %88 = vmatprep.subr.mxu0 0.0
    %89 = vmatpush1.msra.mxu0 0.0
    %90 = vmatprep.subr.mxu0 0.0
    %91 = vmatpush1.msra.mxu0 0.0
    %92 = vmatprep.subr.mxu0 0.0
    %93 = vmatpush1.msra.mxu0 0.0
    %94 = vmatprep.subr.mxu0 0.0
    %95 = vmatpush1.msra.mxu0 0.0
    %96 = vmatprep.subr.mxu0 0.0
    %97 = vmatpush1.msra.mxu0 0.0
    %98 = vmatprep.subr.mxu0 0.0
    %99 = vmatpush1.msra.mxu0 0.0
    %100 = vmatprep.subr.mxu0 0.0
    %101 = vmatpush1.msra.mxu0 0.0
    %102 = vmatprep.subr.mxu0 0.0
    %103 = vmatpush1.msra.mxu0 0.0
    %104 = vmatprep.subr.mxu0 0.0
    %105 = vmatpush1.msra.mxu0 0.0
    %106 = vmatprep.subr.mxu0 0.0
    %107 = vmatpush1.msra.mxu0 0.0
    %108 = vmatprep.subr.mxu0 0.0
    %109 = vmatpush1.msra.mxu0 0.0
    %110 = vmatprep.mubr.f32.mxu0 0.0
    %111 = vmatmul.mubr.f32.gmra.mrb[0].mxu0 %v22
    %v112 = vpop.f32.mrb[0].mxu0
    %v113 = vadd.f32 %v44, %v112
    %v114 = vpop.f32.mrb[0].mxu0
    %115 = vdwg.mxu0
    %vm116 = vcmp.gt.f32.partialorder %v113, 0.0
    %v117 = vmul.f32 %v113, 0.2
    %v118 = vsel %vm116, %v113, %v117
    %v119 = vld [vmem:[%s3] sm:$0x1]
    %s120 = sld [smem:[#allocation2]]
    %v121 = vstv %s120
    %vm122 = vcmask 523264
    %v124 = vsel %vm122, %v119, 0
    %v127 = vsel %vm122, %v118, 0
    %129 = vmatprep.subr.mxu0 0.0
    %130 = vmatpush1.xpose.msra.mxu0 %v127
    %131 = vmatprep.subr.mxu0 0.0
    %132 = vmatpush1.xpose.msra.mxu0 0.0
    %133 = vmatprep.subr.mxu0 0.0
    %134 = vmatpush1.xpose.msra.mxu0 0.0
    %135 = vmatprep.subr.mxu0 0.0
    %136 = vmatpush1.xpose.msra.mxu0 0.0
    %137 = vmatprep.subr.mxu0 0.0
    %138 = vmatpush1.xpose.msra.mxu0 0.0
    %139 = vmatprep.subr.mxu0 0.0
    %140 = vmatpush1.xpose.msra.mxu0 0.0
    %141 = vmatprep.subr.mxu0 0.0
    %142 = vmatpush1.xpose.msra.mxu0 0.0
    %143 = vmatprep.subr.mxu0 0.0
    %144 = vmatpush1.xpose.msra.mxu0 0.0
    %145 = vmatprep.subr.mxu0 0.0
    %146 = vmatpush1.xpose.msra.mxu0 0.0
    %147 = vmatprep.subr.mxu0 0.0
    %148 = vmatpush1.xpose.msra.mxu0 0.0
    %149 = vmatprep.subr.mxu0 0.0
    %150 = vmatpush1.xpose.msra.mxu0 0.0
    %151 = vmatprep.subr.mxu0 0.0
    %152 = vmatpush1.xpose.msra.mxu0 0.0
    %153 = vmatprep.subr.mxu0 0.0
    %154 = vmatpush1.xpose.msra.mxu0 0.0
    %155 = vmatprep.subr.mxu0 0.0
    %156 = vmatpush1.xpose.msra.mxu0 0.0
    %157 = vmatprep.subr.mxu0 0.0
    %158 = vmatpush1.xpose.msra.mxu0 0.0
    %159 = vmatprep.subr.mxu0 0.0
    %160 = vmatpush1.xpose.msra.mxu0 0.0
    %161 = vmatprep.subr.mxu0 0.0
    %162 = vmatpush1.xpose.msra.mxu0 0.0
    %163 = vmatprep.subr.mxu0 0.0
    %164 = vmatpush1.xpose.msra.mxu0 0.0
    %165 = vmatprep.subr.mxu0 0.0
    %166 = vmatpush1.xpose.msra.mxu0 0.0
    %167 = vmatprep.subr.mxu0 0.0
    %168 = vmatpush1.xpose.msra.mxu0 0.0
    %169 = vmatprep.subr.mxu0 0.0
    %170 = vmatpush1.xpose.msra.mxu0 0.0
    %171 = vmatprep.subr.mxu0 0.0
    %172 = vmatpush1.xpose.msra.mxu0 0.0
    %173 = vmatprep.subr.mxu0 0.0
    %174 = vmatpush1.xpose.msra.mxu0 0.0
    %175 = vmatprep.subr.mxu0 0.0
    %176 = vmatpush1.xpose.msra.mxu0 0.0
    %177 = vmatprep.subr.mxu0 0.0
    %178 = vmatpush1.xpose.msra.mxu0 0.0
    %179 = vmatprep.subr.mxu0 0.0
    %180 = vmatpush1.xpose.msra.mxu0 0.0
    %181 = vmatprep.subr.mxu0 0.0
    %182 = vmatpush1.xpose.msra.mxu0 0.0
    %183 = vmatprep.subr.mxu0 0.0
    %184 = vmatpush1.xpose.msra.mxu0 0.0
    %185 = vmatprep.subr.mxu0 0.0
    %186 = vmatpush1.xpose.msra.mxu0 0.0
    %187 = vmatprep.subr.mxu0 0.0
    %188 = vmatpush1.xpose.msra.mxu0 0.0
    %189 = vmatprep.subr.mxu0 0.0
    %190 = vmatpush1.xpose.msra.mxu0 0.0
    %191 = vmatprep.subr.mxu0 0.0
    %192 = vmatpush1.xpose.msra.mxu0 0.0
    %193 = vmatprep.mubr.f32.mxu0 0.0
    %194 = vmatmul.mubr.f32.gmra.mrb[0].mxu0 %v124
    %v195 = vpop.f32.mrb[0].mxu0
    %v196 = vadd.f32 %v121, %v195
    %v197 = vpop.f32.mrb[0].mxu0
    %198 = vdwg.mxu0
    %vm199 = vcmask 57344
    %200 = vst.msk [vmem:[#allocation3] sm:$0x1] %vm199, %v196
    // Predicated region
    $region22: #{tpu_custom_call.1} parent=1 // pred_check
      _
    $region23: #{tpu_custom_call.1} parent=1 // pred_check_branch
      %202 = sbr.rel (0) target = $region25
    $region24: #{tpu_custom_call.1} parent=1 // pred_region
      %s204 = ssub.s32 16, 16
      %205 = vsyncadd [#allocation4], %s204
      %s207 = sshll.u32 [#allocation3], 4
      %s208 = int_to_ptr.vmem [resolvable:$true] %s207
      %210 = dma.vmem_to_hbm [thread:$0]  %s208, 16, %s5, [#allocation4]
    $region25: #{tpu_custom_call.1} parent=1 // pred_fallthru
      _
    // Predicated region
    $region26: #{tpu_custom_call.1} parent=1 // pred_check
      _
    $region27: #{tpu_custom_call.1} parent=1 // pred_check_branch
      %212 = sbr.rel (0) target = $region29
    $region28: #{tpu_custom_call.1} parent=1 // pred_region
      %213 = dma.done [#allocation4], 16
    $region29: #{tpu_custom_call.1} parent=1 // pred_fallthru
      _
    %214 = vsyncpa [#allocation4], 1

</llo_original>
